<compile_context>
chip_gen: v7x
topology: tpu7x:2x2x1
jax: 0.10.0
libtpu: 0.0.40
codegen_flags: <defaults>
</compile_context>

<pallas_src>
import functools

import jax
import jax.numpy as jnp
from jax.experimental import pallas as pl
from jax.experimental.pallas import tpu as pltpu

SUBLANE = 8  # f32 sublane granularity


def _round_up(x, m):
    return (x + m - 1) // m * m


def _mlp_kernel(x_ref,
                w1_ref, b1_ref,
                w2_ref, b2_ref,
                w3_ref, b3_ref,
                w4_ref, b4_ref,
                o_ref):
    """Fused fc1->relu -> fc2->relu -> fc3->relu -> fc4 for one batch tile.

    All tensors are at their real (unpadded) feature widths; Mosaic lane-pads
    them inside VMEM as needed.  Accumulation is f32 on the MXU.
    """
    h = x_ref[...]

    h = jnp.dot(h, w1_ref[...], preferred_element_type=jnp.float32) + b1_ref[...]
    h = jnp.maximum(h, 0.0)

    h = jnp.dot(h, w2_ref[...], preferred_element_type=jnp.float32) + b2_ref[...]
    h = jnp.maximum(h, 0.0)

    h = jnp.dot(h, w3_ref[...], preferred_element_type=jnp.float32) + b3_ref[...]
    h = jnp.maximum(h, 0.0)

    out = jnp.dot(h, w4_ref[...], preferred_element_type=jnp.float32) + b4_ref[...]
    o_ref[...] = out.astype(o_ref.dtype)


def _num_tensorcores():
    """TensorCores per chip: 2 on v7x, 1 on v5e/v6e (1 if unknown)."""
    try:
        kind = jax.devices()[0].device_kind.lower()
    except Exception:
        return 1
    return 2 if "v7" in kind else 1


def reference_forward(x, p):
    """Pure-JAX reference with identical semantics (also the small-batch path)."""
    h = jnp.maximum(x @ p["w1"] + p["b1"], 0.0)
    h = jnp.maximum(h @ p["w2"] + p["b2"], 0.0)
    h = jnp.maximum(h @ p["w3"] + p["b3"], 0.0)
    return h @ p["w4"] + p["b4"]


def torch_model_forward(x, params, *, batch_tile=None, max_batch_tile=2048,
                        use_pallas=None):
    """Fused MLP forward via a single Pallas kernel, tiled over the batch only.

    x:      (B, nInputs) float32
    params: dict with w1..w4 of shape (in, out) and b1..b4 of shape (out,)
    """
    B, n_in = x.shape
    n_out = params["w4"].shape[1]

    # Small-batch bypass: at tiny B the pallas_call fixed cost loses to fused XLA.
    if use_pallas is None:
        use_pallas = B >= 512
    if not use_pallas:
        return reference_forward(x, params)

    # Weights stay unpadded; biases become (1, n) rows (free layout change).
    w1, w2, w3, w4 = params["w1"], params["w2"], params["w3"], params["w4"]
    b1 = params["b1"].reshape(1, -1)
    b2 = params["b2"].reshape(1, -1)
    b3 = params["b3"].reshape(1, -1)
    b4 = params["b4"].reshape(1, -1)

    # --- batch tile: 1 grid step on v5e/v6e, even >=2 steps on v7x ----------
    if batch_tile is None:
        n_cores = _num_tensorcores()
        if n_cores <= 1:
            batch_tile = min(B, max_batch_tile)
        else:
            per_core = _round_up(pl.cdiv(B, n_cores), SUBLANE)
            batch_tile = min(max_batch_tile, max(SUBLANE, per_core))
    batch_tile = min(batch_tile, B)

    if batch_tile == B:
        # Single grid step: full-array batch block, no padding needed at all.
        Bp = B
    else:
        batch_tile = _round_up(batch_tile, SUBLANE)
        Bp = _round_up(B, batch_tile)

    x_in = x if Bp == B else jnp.pad(x, ((0, Bp - B), (0, 0)))
    grid = (Bp // batch_tile,)

    # Replicated (constant-index) full-array blocks for weights & biases.
    def _rep(a):
        return pl.BlockSpec(a.shape, lambda i: (0, 0))

    out = pl.pallas_call(
        _mlp_kernel,
        out_shape=jax.ShapeDtypeStruct((Bp, n_out), jnp.float32),
        grid=grid,
        in_specs=[
            pl.BlockSpec((batch_tile, n_in), lambda i: (i, 0)),  # x tile
            _rep(w1), _rep(b1),
            _rep(w2), _rep(b2),
            _rep(w3), _rep(b3),
            _rep(w4), _rep(b4),
        ],
        out_specs=pl.BlockSpec((batch_tile, n_out), lambda i: (i, 0)),
        compiler_params=pltpu.CompilerParams(
            dimension_semantics=("parallel",),
        ),
    )(x_in, w1, b1, w2, b2, w3, b3, w4, b4)

    # Padded batch rows carry bias-driven garbage -> slice them off.
    return out if Bp == B else out[:B]


def init_params(key, n_inputs, n_outputs, n_nodes):
    """PyTorch-style (Kaiming-uniform-ish) init; weights stored as (in, out)."""
    def _linear(k, fan_in, fan_out):
        kw, kb = jax.random.split(k)
        bound = 1.0 / jnp.sqrt(jnp.float32(fan_in))
        w = jax.random.uniform(kw, (fan_in, fan_out), jnp.float32, -bound, bound)
        b = jax.random.uniform(kb, (fan_out,), jnp.float32, -bound, bound)
        return w, b

    k1, k2, k3, k4 = jax.random.split(key, 4)
    w1, b1 = _linear(k1, n_inputs, n_nodes)
    w2, b2 = _linear(k2, n_nodes, n_nodes)
    w3, b3 = _linear(k3, n_nodes, n_nodes)
    w4, b4 = _linear(k4, n_nodes, n_outputs)
    return dict(w1=w1, b1=b1, w2=w2, b2=b2, w3=w3, b3=b3, w4=w4, b4=b4)


if __name__ == "__main__":
    # Shapes consistent with the module's forward: nInputs=4, nNodes=32, nOutputs=2.
    n_inputs, n_outputs, n_nodes = 4, 2, 32

    key = jax.random.PRNGKey(0)
    kx, kp = jax.random.split(key)
    params = init_params(kp, n_inputs, n_outputs, n_nodes)

    # 1) Small batch, single grid step (Pallas path forced on to exercise the kernel).
    x_small = jax.random.normal(kx, (8, n_inputs), jnp.float32)
    fwd = jax.jit(functools.partial(torch_model_forward, use_pallas=True))
    y_small = jax.block_until_ready(fwd(x_small, params))
    assert y_small.shape == (8, n_outputs)
    assert jnp.allclose(y_small, reference_forward(x_small, params),
                        atol=1e-4, rtol=1e-4)

    # 2) Larger batch with explicit tiling (multi-step grid + batch padding path).
    x_big = jax.random.normal(kx, (200, n_inputs), jnp.float32)
    fwd_tiled = jax.jit(functools.partial(torch_model_forward,
                                          use_pallas=True, batch_tile=64))
    y_big = jax.block_until_ready(fwd_tiled(x_big, params))
    assert y_big.shape == (200, n_outputs)
    assert jnp.allclose(y_big, reference_forward(x_big, params),
                        atol=1e-4, rtol=1e-4)

    print("KERNEL_OK")
</pallas_src>

<mosaic_0001>
module attributes {stable_mosaic.version = 11 : i64} {
  func.func @_mlp_kernel(%arg0: i32, %arg1: memref<8x4xf32, #tpu.memory_space<vmem>>, %arg2: memref<4x32xf32, #tpu.memory_space<vmem>>, %arg3: memref<1x32xf32, #tpu.memory_space<vmem>>, %arg4: memref<32x32xf32, #tpu.memory_space<vmem>>, %arg5: memref<1x32xf32, #tpu.memory_space<vmem>>, %arg6: memref<32x32xf32, #tpu.memory_space<vmem>>, %arg7: memref<1x32xf32, #tpu.memory_space<vmem>>, %arg8: memref<32x2xf32, #tpu.memory_space<vmem>>, %arg9: memref<1x2xf32, #tpu.memory_space<vmem>>, %arg10: memref<8x2xf32, #tpu.memory_space<vmem>>) attributes {dimension_semantics = [#tpu.dimension_semantics<parallel>], iteration_bounds = array<i64: 1>, scalar_prefetch = 0 : i64, scratch_operands = 0 : i64, tpu.core_type = #tpu.core_type<tc>, window_params = [{transform_indices = @transform_0, window_bounds = array<i64: 8, 4>}, {pipeline_mode = #tpu.pipeline_mode<synchronous>, transform_indices = @transform_1, window_bounds = array<i64: 4, 32>}, {pipeline_mode = #tpu.pipeline_mode<synchronous>, transform_indices = @transform_2, window_bounds = array<i64: 1, 32>}, {pipeline_mode = #tpu.pipeline_mode<synchronous>, transform_indices = @transform_3, window_bounds = array<i64: 32, 32>}, {pipeline_mode = #tpu.pipeline_mode<synchronous>, transform_indices = @transform_4, window_bounds = array<i64: 1, 32>}, {pipeline_mode = #tpu.pipeline_mode<synchronous>, transform_indices = @transform_5, window_bounds = array<i64: 32, 32>}, {pipeline_mode = #tpu.pipeline_mode<synchronous>, transform_indices = @transform_6, window_bounds = array<i64: 1, 32>}, {pipeline_mode = #tpu.pipeline_mode<synchronous>, transform_indices = @transform_7, window_bounds = array<i64: 32, 2>}, {pipeline_mode = #tpu.pipeline_mode<synchronous>, transform_indices = @transform_8, window_bounds = array<i64: 1, 2>}, {transform_indices = @transform_9, window_bounds = array<i64: 8, 2>}]} {
    %c0 = arith.constant 0 : index
    %c0_0 = arith.constant 0 : index
    %0 = vector.load %arg1[%c0, %c0_0] : memref<8x4xf32, #tpu.memory_space<vmem>>, vector<8x4xf32>
    %c0_1 = arith.constant 0 : index
    %c0_2 = arith.constant 0 : index
    %1 = vector.load %arg2[%c0_1, %c0_2] : memref<4x32xf32, #tpu.memory_space<vmem>>, vector<4x32xf32>
    %cst = arith.constant dense<0.000000e+00> : vector<8x32xf32>
    %2 = tpu.matmul %0, %1, %cst {dimension_numbers = #tpu.dot_dimension_numbers<[1], [0], [0], [1], [0, 0, 1, 1], [], []>} : vector<8x4xf32>, vector<4x32xf32>, vector<8x32xf32> -> vector<8x32xf32>
    %c0_3 = arith.constant 0 : index
    %c0_4 = arith.constant 0 : index
    %3 = vector.load %arg3[%c0_3, %c0_4] : memref<1x32xf32, #tpu.memory_space<vmem>>, vector<1x32xf32>
    %4 = vector.broadcast %3 : vector<1x32xf32> to vector<8x32xf32>
    %5 = arith.addf %2, %4 : vector<8x32xf32>
    %cst_5 = arith.constant 0.000000e+00 : f32
    %6 = vector.broadcast %cst_5 : f32 to vector<8x32xf32>
    %7 = arith.maximumf %5, %6 : vector<8x32xf32>
    %c0_6 = arith.constant 0 : index
    %c0_7 = arith.constant 0 : index
    %8 = vector.load %arg4[%c0_6, %c0_7] : memref<32x32xf32, #tpu.memory_space<vmem>>, vector<32x32xf32>
    %cst_8 = arith.constant dense<0.000000e+00> : vector<8x32xf32>
    %9 = tpu.matmul %7, %8, %cst_8 {dimension_numbers = #tpu.dot_dimension_numbers<[1], [0], [0], [1], [0, 0, 1, 1], [], []>} : vector<8x32xf32>, vector<32x32xf32>, vector<8x32xf32> -> vector<8x32xf32>
    %c0_9 = arith.constant 0 : index
    %c0_10 = arith.constant 0 : index
    %10 = vector.load %arg5[%c0_9, %c0_10] : memref<1x32xf32, #tpu.memory_space<vmem>>, vector<1x32xf32>
    %11 = vector.broadcast %10 : vector<1x32xf32> to vector<8x32xf32>
    %12 = arith.addf %9, %11 : vector<8x32xf32>
    %cst_11 = arith.constant 0.000000e+00 : f32
    %13 = vector.broadcast %cst_11 : f32 to vector<8x32xf32>
    %14 = arith.maximumf %12, %13 : vector<8x32xf32>
    %c0_12 = arith.constant 0 : index
    %c0_13 = arith.constant 0 : index
    %15 = vector.load %arg6[%c0_12, %c0_13] : memref<32x32xf32, #tpu.memory_space<vmem>>, vector<32x32xf32>
    %cst_14 = arith.constant dense<0.000000e+00> : vector<8x32xf32>
    %16 = tpu.matmul %14, %15, %cst_14 {dimension_numbers = #tpu.dot_dimension_numbers<[1], [0], [0], [1], [0, 0, 1, 1], [], []>} : vector<8x32xf32>, vector<32x32xf32>, vector<8x32xf32> -> vector<8x32xf32>
    %c0_15 = arith.constant 0 : index
    %c0_16 = arith.constant 0 : index
    %17 = vector.load %arg7[%c0_15, %c0_16] : memref<1x32xf32, #tpu.memory_space<vmem>>, vector<1x32xf32>
    %18 = vector.broadcast %17 : vector<1x32xf32> to vector<8x32xf32>
    %19 = arith.addf %16, %18 : vector<8x32xf32>
    %cst_17 = arith.constant 0.000000e+00 : f32
    %20 = vector.broadcast %cst_17 : f32 to vector<8x32xf32>
    %21 = arith.maximumf %19, %20 : vector<8x32xf32>
    %c0_18 = arith.constant 0 : index
    %c0_19 = arith.constant 0 : index
    %22 = vector.load %arg8[%c0_18, %c0_19] : memref<32x2xf32, #tpu.memory_space<vmem>>, vector<32x2xf32>
    %cst_20 = arith.constant dense<0.000000e+00> : vector<8x2xf32>
    %23 = tpu.matmul %21, %22, %cst_20 {dimension_numbers = #tpu.dot_dimension_numbers<[1], [0], [0], [1], [0, 0, 1, 1], [], []>} : vector<8x32xf32>, vector<32x2xf32>, vector<8x2xf32> -> vector<8x2xf32>
    %c0_21 = arith.constant 0 : index
    %c0_22 = arith.constant 0 : index
    %24 = vector.load %arg9[%c0_21, %c0_22] : memref<1x2xf32, #tpu.memory_space<vmem>>, vector<1x2xf32>
    %25 = vector.broadcast %24 : vector<1x2xf32> to vector<8x2xf32>
    %26 = arith.addf %23, %25 : vector<8x2xf32>
    %c0_23 = arith.constant 0 : index
    %c0_24 = arith.constant 0 : index
    %27 = vector.load %arg10[%c0_23, %c0_24] : memref<8x2xf32, #tpu.memory_space<vmem>>, vector<8x2xf32>
    tpu.vector_store %arg10[%c0_23, %c0_24], %26 {strides = array<i32>} : memref<8x2xf32, #tpu.memory_space<vmem>>, vector<8x2xf32>,
    return
  }
  func.func @transform_0(%arg0: i32) -> (i32, i32) {
    %c0_i32 = arith.constant 0 : i32
    %c0_i32_0 = arith.constant 0 : i32
    return %arg0, %c0_i32 : i32, i32
  }
  func.func @transform_1(%arg0: i32) -> (i32, i32) {
    %c0_i32 = arith.constant 0 : i32
    %c0_i32_0 = arith.constant 0 : i32
    %c0_i32_1 = arith.constant 0 : i32
    return %c0_i32, %c0_i32_0 : i32, i32
  }
  func.func @transform_2(%arg0: i32) -> (i32, i32) {
    %c0_i32 = arith.constant 0 : i32
    %c0_i32_0 = arith.constant 0 : i32
    %c0_i32_1 = arith.constant 0 : i32
    return %c0_i32, %c0_i32_0 : i32, i32
  }
  func.func @transform_3(%arg0: i32) -> (i32, i32) {
    %c0_i32 = arith.constant 0 : i32
    %c0_i32_0 = arith.constant 0 : i32
    %c0_i32_1 = arith.constant 0 : i32
    return %c0_i32, %c0_i32_0 : i32, i32
  }
  func.func @transform_4(%arg0: i32) -> (i32, i32) {
    %c0_i32 = arith.constant 0 : i32
    %c0_i32_0 = arith.constant 0 : i32
    %c0_i32_1 = arith.constant 0 : i32
    return %c0_i32, %c0_i32_0 : i32, i32
  }
  func.func @transform_5(%arg0: i32) -> (i32, i32) {
    %c0_i32 = arith.constant 0 : i32
    %c0_i32_0 = arith.constant 0 : i32
    %c0_i32_1 = arith.constant 0 : i32
    return %c0_i32, %c0_i32_0 : i32, i32
  }
  func.func @transform_6(%arg0: i32) -> (i32, i32) {
    %c0_i32 = arith.constant 0 : i32
    %c0_i32_0 = arith.constant 0 : i32
    %c0_i32_1 = arith.constant 0 : i32
    return %c0_i32, %c0_i32_0 : i32, i32
  }
  func.func @transform_7(%arg0: i32) -> (i32, i32) {
    %c0_i32 = arith.constant 0 : i32
    %c0_i32_0 = arith.constant 0 : i32
    %c0_i32_1 = arith.constant 0 : i32
    return %c0_i32, %c0_i32_0 : i32, i32
  }
  func.func @transform_8(%arg0: i32) -> (i32, i32) {
    %c0_i32 = arith.constant 0 : i32
    %c0_i32_0 = arith.constant 0 : i32
    %c0_i32_1 = arith.constant 0 : i32
    return %c0_i32, %c0_i32_0 : i32, i32
  }
  func.func @transform_9(%arg0: i32) -> (i32, i32) {
    %c0_i32 = arith.constant 0 : i32
    %c0_i32_0 = arith.constant 0 : i32
    return %arg0, %c0_i32 : i32, i32
  }
}

</mosaic_0001>

<llo_original>
// kernel: torch_model_forward.1
$region0: #{torch_model_forward.1}
  #allocation0 [shape = 'u32[]', space=smem, size = 0x4, offset = 0x4, fixed_abs, tag = 'smem constant byte address 0x4 - core index']
  #allocation1 [shape = 'u32[144,128]{1,0:T(1,128)}', space=vmem, size = 0x12000, scoped, tag = 'internal scratch']
  %s0 = inlined_call_operand.vmem [shape: f32[8,4], index: 0, kind: input, shape index: {}]
  %s1 = inlined_call_operand.vmem [shape: f32[4,32], index: 1, kind: input, shape index: {}]
  %s2 = inlined_call_operand.hbm [shape: f32[1,32], index: 2, kind: input, shape index: {}]
  %s3 = inlined_call_operand.vmem [shape: f32[32,32], index: 3, kind: input, shape index: {}]
  %s4 = inlined_call_operand.hbm [shape: f32[1,32], index: 4, kind: input, shape index: {}]
  %s5 = inlined_call_operand.vmem [shape: f32[32,32], index: 5, kind: input, shape index: {}]
  %s6 = inlined_call_operand.vmem [shape: f32[1,32], index: 6, kind: input, shape index: {}]
  %s7 = inlined_call_operand.vmem [shape: f32[32,2], index: 7, kind: input, shape index: {}]
  %s8 = inlined_call_operand.vmem [shape: f32[1,2], index: 8, kind: input, shape index: {}]
  %s9 = inlined_call_operand.vmem [shape: f32[8,2], index: 9, kind: output, shape index: {}]
  %s10 = sld [smem:[#allocation0]]
  $region54: #{torch_model_forward.1} parent=0
    _
  %s12 = ssub.s32 1, %s10
  %s13 = scalar_select 0, %s12, %s10
  $region1: #{torch_model_forward.1} parent=0
    #allocation2 [shape = 'u8[512]{0}', space=vmem, size = 0x400, scoped, tag = 'input window, operand 2, single buffered']
    #allocation3 [shape = 's32[1]{0}', space=sflag, size = 0x4, scoped, tag = 'scoped memory for torch_model_forward.1']
    #allocation4 [shape = 'u8[512]{0}', space=vmem, size = 0x400, scoped, tag = 'input window, operand 4, single buffered']
    #allocation5 [shape = 's32[1]{0}', space=sflag, size = 0x4, scoped, tag = 'scoped memory for torch_model_forward.1']
    %14 = vsyncpa [#allocation3], 0
    %15 = vsyncpa [#allocation5], 0
    // Predicated region
    $region2: #{torch_model_forward.1} parent=1 // pred_check
      _
    $region3: #{torch_model_forward.1} parent=1 // pred_check_branch
      %17 = sbr.rel (0) target = $region5
    $region4: #{torch_model_forward.1} parent=1 // pred_region
      _
    $region5: #{torch_model_forward.1} parent=1 // pred_fallthru
      _
    // Predicated region
    $region6: #{torch_model_forward.1} parent=1 // pred_check
      _
    $region7: #{torch_model_forward.1} parent=1 // pred_check_branch
      %19 = sbr.rel (0) target = $region9
    $region8: #{torch_model_forward.1} parent=1 // pred_region
      _
    $region9: #{torch_model_forward.1} parent=1 // pred_fallthru
      _
    // Predicated region
    $region10: #{torch_model_forward.1} parent=1 // pred_check
      _
    $region11: #{torch_model_forward.1} parent=1 // pred_check_branch
      %21 = sbr.rel (0) target = $region13
    $region12: #{torch_model_forward.1} parent=1 // pred_region
      %s23 = ssub.s32 16, 16
      %24 = vsyncadd [#allocation3], %s23
      %s26 = sshll.u32 [#allocation2], 4
      %s27 = int_to_ptr.vmem [resolvable:$true] %s26
      %29 = dma.hbm_to_vmem [thread:$0]  %s2, 16, %s27, [#allocation3]
    $region13: #{torch_model_forward.1} parent=1 // pred_fallthru
      _
    // Predicated region
    $region14: #{torch_model_forward.1} parent=1 // pred_check
      _
    $region15: #{torch_model_forward.1} parent=1 // pred_check_branch
      %31 = sbr.rel (0) target = $region17
    $region16: #{torch_model_forward.1} parent=1 // pred_region
      _
    $region17: #{torch_model_forward.1} parent=1 // pred_fallthru
      _
    // Predicated region
    $region18: #{torch_model_forward.1} parent=1 // pred_check
      _
    $region19: #{torch_model_forward.1} parent=1 // pred_check_branch
      %33 = sbr.rel (0) target = $region21
    $region20: #{torch_model_forward.1} parent=1 // pred_region
      %s35 = ssub.s32 16, 16
      %36 = vsyncadd [#allocation5], %s35
      %s38 = sshll.u32 [#allocation4], 4
      %s39 = int_to_ptr.vmem [resolvable:$true] %s38
      %41 = dma.hbm_to_vmem [thread:$0]  %s4, 16, %s39, [#allocation5]
    $region21: #{torch_model_forward.1} parent=1 // pred_fallthru
      _
    // Predicated region
    $region22: #{torch_model_forward.1} parent=1 // pred_check
      _
    $region23: #{torch_model_forward.1} parent=1 // pred_check_branch
      %43 = sbr.rel (0) target = $region25
    $region24: #{torch_model_forward.1} parent=1 // pred_region
      _
    $region25: #{torch_model_forward.1} parent=1 // pred_fallthru
      _
    // Predicated region
    $region26: #{torch_model_forward.1} parent=1 // pred_check
      _
    $region27: #{torch_model_forward.1} parent=1 // pred_check_branch
      %45 = sbr.rel (0) target = $region29
    $region28: #{torch_model_forward.1} parent=1 // pred_region
      _
    $region29: #{torch_model_forward.1} parent=1 // pred_fallthru
      _
    // Predicated region
    $region30: #{torch_model_forward.1} parent=1 // pred_check
      _
    $region31: #{torch_model_forward.1} parent=1 // pred_check_branch
      %47 = sbr.rel (0) target = $region33
    $region32: #{torch_model_forward.1} parent=1 // pred_region
      _
    $region33: #{torch_model_forward.1} parent=1 // pred_fallthru
      _
    // Predicated region
    $region34: #{torch_model_forward.1} parent=1 // pred_check
      _
    $region35: #{torch_model_forward.1} parent=1 // pred_check_branch
      %49 = sbr.rel (0) target = $region37
    $region36: #{torch_model_forward.1} parent=1 // pred_region
      _
    $region37: #{torch_model_forward.1} parent=1 // pred_fallthru
      _
    // Predicated region
    $region38: #{torch_model_forward.1} parent=1 // pred_check
      _
    $region39: #{torch_model_forward.1} parent=1 // pred_check_branch
      %51 = sbr.rel (0) target = $region41
    $region40: #{torch_model_forward.1} parent=1 // pred_region
      %52 = dma.done [#allocation3], 16
    $region41: #{torch_model_forward.1} parent=1 // pred_fallthru
      _
    // Predicated region
    $region42: #{torch_model_forward.1} parent=1 // pred_check
      _
    $region43: #{torch_model_forward.1} parent=1 // pred_check_branch
      %54 = sbr.rel (0) target = $region45
    $region44: #{torch_model_forward.1} parent=1 // pred_region
      %55 = dma.done [#allocation5], 16
    $region45: #{torch_model_forward.1} parent=1 // pred_fallthru
      _
    %v56 = vld [vmem:[%s0] sm:$0xff]
    %v57 = vld [vmem:[%s1] sm:$0xf]
    %v58 = vld [vmem:[#allocation2] sm:$0x1]
    %v60 = vlaneseq
    %v61 = vshrl.u32 %v60, 7
    %v62 = vsub.s32 0, %v61
    %v63 = vrot.slane %v58, %v62
    %vm65 = vcmask 31744
    %v67 = vsel %vm65, %v56, 0
    %vm69 = vcmask 1043456
    %v71 = vsel %vm69, %v57, 0
    %73 = vmatprep.subr.mxu0 0.0
    %74 = vmatpush1.msra.mxu0 %v71
    %75 = vmatprep.subr.mxu0 0.0
    %76 = vmatpush1.msra.mxu0 0.0
    %77 = vmatprep.subr.mxu0 0.0
    %78 = vmatpush1.msra.mxu0 0.0
    %79 = vmatprep.subr.mxu0 0.0
    %80 = vmatpush1.msra.mxu0 0.0
    %81 = vmatprep.subr.mxu0 0.0
    %82 = vmatpush1.msra.mxu0 0.0
    %83 = vmatprep.subr.mxu0 0.0
    %84 = vmatpush1.msra.mxu0 0.0
    %85 = vmatprep.subr.mxu0 0.0
    %86 = vmatpush1.msra.mxu0 0.0
    %87 = vmatprep.subr.mxu0 0.0
    %88 = vmatpush1.msra.mxu0 0.0
    %89 = vmatprep.subr.mxu0 0.0
    %90 = vmatpush1.msra.mxu0 0.0
    %91 = vmatprep.subr.mxu0 0.0
    %92 = vmatpush1.msra.mxu0 0.0
    %93 = vmatprep.subr.mxu0 0.0
    %94 = vmatpush1.msra.mxu0 0.0
    %95 = vmatprep.subr.mxu0 0.0
    %96 = vmatpush1.msra.mxu0 0.0
    %97 = vmatprep.subr.mxu0 0.0
    %98 = vmatpush1.msra.mxu0 0.0
    %99 = vmatprep.subr.mxu0 0.0
    %100 = vmatpush1.msra.mxu0 0.0
    %101 = vmatprep.subr.mxu0 0.0
    %102 = vmatpush1.msra.mxu0 0.0
    %103 = vmatprep.subr.mxu0 0.0
    %104 = vmatpush1.msra.mxu0 0.0
    %105 = vmatprep.subr.mxu0 0.0
    %106 = vmatpush1.msra.mxu0 0.0
    %107 = vmatprep.subr.mxu0 0.0
    %108 = vmatpush1.msra.mxu0 0.0
    %109 = vmatprep.subr.mxu0 0.0
    %110 = vmatpush1.msra.mxu0 0.0
    %111 = vmatprep.subr.mxu0 0.0
    %112 = vmatpush1.msra.mxu0 0.0
    %113 = vmatprep.subr.mxu0 0.0
    %114 = vmatpush1.msra.mxu0 0.0
    %115 = vmatprep.subr.mxu0 0.0
    %116 = vmatpush1.msra.mxu0 0.0
    %117 = vmatprep.subr.mxu0 0.0
    %118 = vmatpush1.msra.mxu0 0.0
    %119 = vmatprep.subr.mxu0 0.0
    %120 = vmatpush1.msra.mxu0 0.0
    %121 = vmatprep.subr.mxu0 0.0
    %122 = vmatpush1.msra.mxu0 0.0
    %123 = vmatprep.subr.mxu0 0.0
    %124 = vmatpush1.msra.mxu0 0.0
    %125 = vmatprep.subr.mxu0 0.0
    %126 = vmatpush1.msra.mxu0 0.0
    %127 = vmatprep.subr.mxu0 0.0
    %128 = vmatpush1.msra.mxu0 0.0
    %129 = vmatprep.subr.mxu0 0.0
    %130 = vmatpush1.msra.mxu0 0.0
    %131 = vmatprep.subr.mxu0 0.0
    %132 = vmatpush1.msra.mxu0 0.0
    %133 = vmatprep.subr.mxu0 0.0
    %134 = vmatpush1.msra.mxu0 0.0
    %135 = vmatprep.subr.mxu0 0.0
    %136 = vmatpush1.msra.mxu0 0.0
    %137 = vmatprep.mubr.f32.mxu0 0.0
    %138 = vmatmul.mubr.f32.gmra.mrb[0].mxu0 %v67
    %v139 = vpop.f32.mrb[0].mxu0
    %v140 = vadd.f32 %v63, %v139
    %v141 = vpop.f32.mrb[0].mxu0
    %142 = vdwg.mxu0
    %v143 = vmax.f32 %v140, 0.0
    %v144 = vld [vmem:[%s3] sm:$0xff]
    %v145 = vld [vmem:[%s3 + $0x8] sm:$0xff]
    %v146 = vld [vmem:[%s3 + $0x10] sm:$0xff]
    %v147 = vld [vmem:[%s3 + $0x18] sm:$0xff]
    %v148 = vld [vmem:[#allocation4] sm:$0x1]
    %v150 = vlaneseq
    %v151 = vshrl.u32 %v150, 7
    %v152 = vsub.s32 0, %v151
    %v153 = vrot.slane %v148, %v152
    %vm155 = vcmask 261120
    %v157 = vsel %vm155, %v143, 0
    %159 = vmatprep.subr.mxu0 0.0
    %160 = vmatpush1.msra.mxu0 %v144
    %161 = vmatprep.subr.mxu0 0.0
    %162 = vmatpush1.msra.mxu0 %v145
    %163 = vmatprep.subr.mxu0 0.0
    %164 = vmatpush1.msra.mxu0 %v146
    %165 = vmatprep.subr.mxu0 0.0
    %166 = vmatpush1.msra.mxu0 %v147
    %167 = vmatprep.subr.mxu0 0.0
    %168 = vmatpush1.msra.mxu0 0.0
    %169 = vmatprep.subr.mxu0 0.0
    %170 = vmatpush1.msra.mxu0 0.0
    %171 = vmatprep.subr.mxu0 0.0
    %172 = vmatpush1.msra.mxu0 0.0
    %173 = vmatprep.subr.mxu0 0.0
    %174 = vmatpush1.msra.mxu0 0.0
    %175 = vmatprep.subr.mxu0 0.0
    %176 = vmatpush1.msra.mxu0 0.0
    %177 = vmatprep.subr.mxu0 0.0
    %178 = vmatpush1.msra.mxu0 0.0
    %179 = vmatprep.subr.mxu0 0.0
    %180 = vmatpush1.msra.mxu0 0.0
    %181 = vmatprep.subr.mxu0 0.0
    %182 = vmatpush1.msra.mxu0 0.0
    %183 = vmatprep.subr.mxu0 0.0
    %184 = vmatpush1.msra.mxu0 0.0
    %185 = vmatprep.subr.mxu0 0.0
    %186 = vmatpush1.msra.mxu0 0.0
    %187 = vmatprep.subr.mxu0 0.0
    %188 = vmatpush1.msra.mxu0 0.0
    %189 = vmatprep.subr.mxu0 0.0
    %190 = vmatpush1.msra.mxu0 0.0
    %191 = vmatprep.subr.mxu0 0.0
    %192 = vmatpush1.msra.mxu0 0.0
    %193 = vmatprep.subr.mxu0 0.0
    %194 = vmatpush1.msra.mxu0 0.0
    %195 = vmatprep.subr.mxu0 0.0
    %196 = vmatpush1.msra.mxu0 0.0
    %197 = vmatprep.subr.mxu0 0.0
    %198 = vmatpush1.msra.mxu0 0.0
    %199 = vmatprep.subr.mxu0 0.0
    %200 = vmatpush1.msra.mxu0 0.0
    %201 = vmatprep.subr.mxu0 0.0
    %202 = vmatpush1.msra.mxu0 0.0
    %203 = vmatprep.subr.mxu0 0.0
    %204 = vmatpush1.msra.mxu0 0.0
    %205 = vmatprep.subr.mxu0 0.0
    %206 = vmatpush1.msra.mxu0 0.0
    %207 = vmatprep.subr.mxu0 0.0
    %208 = vmatpush1.msra.mxu0 0.0
    %209 = vmatprep.subr.mxu0 0.0
    %210 = vmatpush1.msra.mxu0 0.0
    %211 = vmatprep.subr.mxu0 0.0
    %212 = vmatpush1.msra.mxu0 0.0
    %213 = vmatprep.subr.mxu0 0.0
    %214 = vmatpush1.msra.mxu0 0.0
    %215 = vmatprep.subr.mxu0 0.0
    %216 = vmatpush1.msra.mxu0 0.0
    %217 = vmatprep.subr.mxu0 0.0
    %218 = vmatpush1.msra.mxu0 0.0
    %219 = vmatprep.subr.mxu0 0.0
    %220 = vmatpush1.msra.mxu0 0.0
    %221 = vmatprep.subr.mxu0 0.0
    %222 = vmatpush1.msra.mxu0 0.0
    %223 = vmatprep.mubr.f32.mxu0 0.0
    %224 = vmatmul.mubr.f32.gmra.mrb[0].mxu0 %v157
    %v225 = vpop.f32.mrb[0].mxu0
    %v226 = vadd.f32 %v153, %v225
    %v227 = vpop.f32.mrb[0].mxu0
    %228 = vdwg.mxu0
    %v229 = vmax.f32 %v226, 0.0
    %v230 = vld [vmem:[%s5] sm:$0xff]
    %v231 = vld [vmem:[%s5 + $0x8] sm:$0xff]
    %v232 = vld [vmem:[%s5 + $0x10] sm:$0xff]
    %v233 = vld [vmem:[%s5 + $0x18] sm:$0xff]
    %v234 = vld [vmem:[%s6] sm:$0x1]
    %v236 = vlaneseq
    %v237 = vshrl.u32 %v236, 7
    %v238 = vsub.s32 0, %v237
    %v239 = vrot.slane %v234, %v238
    %v242 = vsel %vm155, %v229, 0
    %244 = vmatprep.subr.mxu0 0.0
    %245 = vmatpush1.msra.mxu0 %v230
    %246 = vmatprep.subr.mxu0 0.0
    %247 = vmatpush1.msra.mxu0 %v231
    %248 = vmatprep.subr.mxu0 0.0
    %249 = vmatpush1.msra.mxu0 %v232
    %250 = vmatprep.subr.mxu0 0.0
    %251 = vmatpush1.msra.mxu0 %v233
    %252 = vmatprep.subr.mxu0 0.0
    %253 = vmatpush1.msra.mxu0 0.0
    %254 = vmatprep.subr.mxu0 0.0
    %255 = vmatpush1.msra.mxu0 0.0
    %256 = vmatprep.subr.mxu0 0.0
    %257 = vmatpush1.msra.mxu0 0.0
    %258 = vmatprep.subr.mxu0 0.0
    %259 = vmatpush1.msra.mxu0 0.0
    %260 = vmatprep.subr.mxu0 0.0
    %261 = vmatpush1.msra.mxu0 0.0
    %262 = vmatprep.subr.mxu0 0.0
    %263 = vmatpush1.msra.mxu0 0.0
    %264 = vmatprep.subr.mxu0 0.0
    %265 = vmatpush1.msra.mxu0 0.0
    %266 = vmatprep.subr.mxu0 0.0
    %267 = vmatpush1.msra.mxu0 0.0
    %268 = vmatprep.subr.mxu0 0.0
    %269 = vmatpush1.msra.mxu0 0.0
    %270 = vmatprep.subr.mxu0 0.0
    %271 = vmatpush1.msra.mxu0 0.0
    %272 = vmatprep.subr.mxu0 0.0
    %273 = vmatpush1.msra.mxu0 0.0
    %274 = vmatprep.subr.mxu0 0.0
    %275 = vmatpush1.msra.mxu0 0.0
    %276 = vmatprep.subr.mxu0 0.0
    %277 = vmatpush1.msra.mxu0 0.0
    %278 = vmatprep.subr.mxu0 0.0
    %279 = vmatpush1.msra.mxu0 0.0
    %280 = vmatprep.subr.mxu0 0.0
    %281 = vmatpush1.msra.mxu0 0.0
    %282 = vmatprep.subr.mxu0 0.0
    %283 = vmatpush1.msra.mxu0 0.0
    %284 = vmatprep.subr.mxu0 0.0
    %285 = vmatpush1.msra.mxu0 0.0
    %286 = vmatprep.subr.mxu0 0.0
    %287 = vmatpush1.msra.mxu0 0.0
    %288 = vmatprep.subr.mxu0 0.0
    %289 = vmatpush1.msra.mxu0 0.0
    %290 = vmatprep.subr.mxu0 0.0
    %291 = vmatpush1.msra.mxu0 0.0
    %292 = vmatprep.subr.mxu0 0.0
    %293 = vmatpush1.msra.mxu0 0.0
    %294 = vmatprep.subr.mxu0 0.0
    %295 = vmatpush1.msra.mxu0 0.0
    %296 = vmatprep.subr.mxu0 0.0
    %297 = vmatpush1.msra.mxu0 0.0
    %298 = vmatprep.subr.mxu0 0.0
    %299 = vmatpush1.msra.mxu0 0.0
    %300 = vmatprep.subr.mxu0 0.0
    %301 = vmatpush1.msra.mxu0 0.0
    %302 = vmatprep.subr.mxu0 0.0
    %303 = vmatpush1.msra.mxu0 0.0
    %304 = vmatprep.subr.mxu0 0.0
    %305 = vmatpush1.msra.mxu0 0.0
    %306 = vmatprep.subr.mxu0 0.0
    %307 = vmatpush1.msra.mxu0 0.0
    %308 = vmatprep.mubr.f32.mxu0 0.0
    %309 = vmatmul.mubr.f32.gmra.mrb[0].mxu0 %v242
    %v310 = vpop.f32.mrb[0].mxu0
    %v311 = vadd.f32 %v239, %v310
    %v312 = vpop.f32.mrb[0].mxu0
    %313 = vdwg.mxu0
    %v314 = vmax.f32 %v311, 0.0
    %v315 = vld [vmem:[%s7] sm:$0xff]
    %v316 = vld [vmem:[%s7 + $0x8] sm:$0xff]
    %v317 = vld [vmem:[%s7 + $0x10] sm:$0xff]
    %v318 = vld [vmem:[%s7 + $0x18] sm:$0xff]
    %v319 = vld [vmem:[%s8] sm:$0x1]
    %v321 = vlaneseq
    %v322 = vshrl.u32 %v321, 7
    %v323 = vsub.s32 0, %v322
    %v324 = vrot.slane %v319, %v323
    %v327 = vsel %vm155, %v314, 0
    %329 = vmatprep.subr.mxu0 0.0
    %330 = vmatpush1.msra.mxu0 %v315
    %331 = vmatprep.subr.mxu0 0.0
    %332 = vmatpush1.msra.mxu0 %v316
    %333 = vmatprep.subr.mxu0 0.0
    %334 = vmatpush1.msra.mxu0 %v317
    %335 = vmatprep.subr.mxu0 0.0
    %336 = vmatpush1.msra.mxu0 %v318
    %337 = vmatprep.subr.mxu0 0.0
    %338 = vmatpush1.msra.mxu0 0.0
    %339 = vmatprep.subr.mxu0 0.0
    %340 = vmatpush1.msra.mxu0 0.0
    %341 = vmatprep.subr.mxu0 0.0
    %342 = vmatpush1.msra.mxu0 0.0
    %343 = vmatprep.subr.mxu0 0.0
    %344 = vmatpush1.msra.mxu0 0.0
    %345 = vmatprep.subr.mxu0 0.0
    %346 = vmatpush1.msra.mxu0 0.0
    %347 = vmatprep.subr.mxu0 0.0
    %348 = vmatpush1.msra.mxu0 0.0
    %349 = vmatprep.subr.mxu0 0.0
    %350 = vmatpush1.msra.mxu0 0.0
    %351 = vmatprep.subr.mxu0 0.0
    %352 = vmatpush1.msra.mxu0 0.0
    %353 = vmatprep.subr.mxu0 0.0
    %354 = vmatpush1.msra.mxu0 0.0
    %355 = vmatprep.subr.mxu0 0.0
    %356 = vmatpush1.msra.mxu0 0.0
    %357 = vmatprep.subr.mxu0 0.0
    %358 = vmatpush1.msra.mxu0 0.0
    %359 = vmatprep.subr.mxu0 0.0
    %360 = vmatpush1.msra.mxu0 0.0
    %361 = vmatprep.subr.mxu0 0.0
    %362 = vmatpush1.msra.mxu0 0.0
    %363 = vmatprep.subr.mxu0 0.0
    %364 = vmatpush1.msra.mxu0 0.0
    %365 = vmatprep.subr.mxu0 0.0
    %366 = vmatpush1.msra.mxu0 0.0
    %367 = vmatprep.subr.mxu0 0.0
    %368 = vmatpush1.msra.mxu0 0.0
    %369 = vmatprep.subr.mxu0 0.0
    %370 = vmatpush1.msra.mxu0 0.0
    %371 = vmatprep.subr.mxu0 0.0
    %372 = vmatpush1.msra.mxu0 0.0
    %373 = vmatprep.subr.mxu0 0.0
    %374 = vmatpush1.msra.mxu0 0.0
    %375 = vmatprep.subr.mxu0 0.0
    %376 = vmatpush1.msra.mxu0 0.0
    %377 = vmatprep.subr.mxu0 0.0
    %378 = vmatpush1.msra.mxu0 0.0
    %379 = vmatprep.subr.mxu0 0.0
    %380 = vmatpush1.msra.mxu0 0.0
    %381 = vmatprep.subr.mxu0 0.0
    %382 = vmatpush1.msra.mxu0 0.0
    %383 = vmatprep.subr.mxu0 0.0
    %384 = vmatpush1.msra.mxu0 0.0
    %385 = vmatprep.subr.mxu0 0.0
    %386 = vmatpush1.msra.mxu0 0.0
    %387 = vmatprep.subr.mxu0 0.0
    %388 = vmatpush1.msra.mxu0 0.0
    %389 = vmatprep.subr.mxu0 0.0
    %390 = vmatpush1.msra.mxu0 0.0
    %391 = vmatprep.subr.mxu0 0.0
    %392 = vmatpush1.msra.mxu0 0.0
    %393 = vmatprep.mubr.f32.mxu0 0.0
    %394 = vmatmul.mubr.f32.gmra.mrb[0].mxu0 %v327
    %v395 = vpop.f32.mrb[0].mxu0
    %v396 = vadd.f32 %v324, %v395
    %v397 = vpop.f32.mrb[0].mxu0
    %398 = vdwg.mxu0
    %vm399 = vcmask 15360
    %400 = vst.msk [vmem:[%s9] sm:$0xff] %vm399, %v396
    // Predicated region
    $region46: #{torch_model_forward.1} parent=1 // pred_check
      _
    $region47: #{torch_model_forward.1} parent=1 // pred_check_branch
      %402 = sbr.rel (0) target = $region49
    $region48: #{torch_model_forward.1} parent=1 // pred_region
      _
    $region49: #{torch_model_forward.1} parent=1 // pred_fallthru
      _
    // Predicated region
    $region50: #{torch_model_forward.1} parent=1 // pred_check
      _
    $region51: #{torch_model_forward.1} parent=1 // pred_check_branch
      %404 = sbr.rel (0) target = $region53
    $region52: #{torch_model_forward.1} parent=1 // pred_region
      _
    $region53: #{torch_model_forward.1} parent=1 // pred_fallthru
      _
    %405 = vsyncpa [#allocation3], 1
    %406 = vsyncpa [#allocation5], 1

</llo_original>
